<compile_context>
chip_gen: v6e
topology: v6e:2x2x1
jax: 0.10.0
libtpu: 0.0.40
codegen_flags: <defaults>
</compile_context>

<pallas_src>
import jax
import jax.numpy as jnp
from jax.experimental import pallas as pl
from jax.experimental.pallas import tpu as pltpu

_LANES = 128
_SUBLANES = 8


def _symkl2d_kernel(x1_ref, x2_ref, out_ref):
    # Blocks are (1, C, TILE_S, 128): channels on an outer block dim, pixels packed
    # densely on the (sublane, lane) plane -> channel reductions are plain VPU work.
    x1 = x1_ref[...].astype(jnp.float32)
    x2 = x2_ref[...].astype(jnp.float32)

    # Stable softmax over channels (axis=1) + log-probs of the logits.
    m1 = jnp.max(x1, axis=1, keepdims=True)
    d1 = x1 - m1
    e1 = jnp.exp(d1)
    s1 = jnp.sum(e1, axis=1, keepdims=True)
    p1 = e1 * (1.0 / s1)                 # softmax(inputs1); one exact divide per pixel
    logp1 = d1 - jnp.log(s1)             # log(softmax(inputs1))

    m2 = jnp.max(x2, axis=1, keepdims=True)
    d2 = x2 - m2
    e2 = jnp.exp(d2)
    s2 = jnp.sum(e2, axis=1, keepdims=True)
    p2 = e2 * (1.0 / s2)
    logp2 = d2 - jnp.log(s2)

    # The module takes log_softmax of the *probabilities*.  p in (0, 1] so
    # exp(p) in (1, e]: no overflow, no max-subtraction needed.
    lse1 = jnp.log(jnp.sum(jnp.exp(p1), axis=1, keepdims=True))
    lse2 = jnp.log(jnp.sum(jnp.exp(p2), axis=1, keepdims=True))

    # Folded symmetric-KL integrand (lq_i = p_i - lse_i, sum_c p_i = 1):
    #   sum_c [p2*(logp2 - lq1) + p1*(logp1 - lq2)]
    #     = sum_c [p1*logp1 + p2*logp2 - 2*p1*p2] + lse1 + lse2
    chan = jnp.sum(p1 * logp1 + p2 * logp2 - 2.0 * (p1 * p2),
                   axis=1, keepdims=True)           # (1, 1, TILE_S, 128)
    per_pixel = chan + lse1 + lse2

    # Reduce the sublane (TILE_S) axis, keep lanes; the cross-lane reduction is
    # deferred to a single tiny jnp.sum in the wrapper.
    out_ref[...] = jnp.sum(per_pixel, axis=2)        # (1, 1, 128)


def _round_up(x, m):
    return ((x + m - 1) // m) * m


def _cdiv(a, b):
    return -(-a // b)


def _pick_pixel_tiling(hw, c, itemsize, target_tile_bytes):
    """Choose (tile_pixels, num_tiles, hw_padded).

    tile_pixels is a multiple of 1024 (=> TILE_S multiple of 8) when tiling is needed,
    or the whole 128-padded image when it already fits the per-step byte budget.
    """
    hw128 = _round_up(hw, _LANES)
    chunk = _SUBLANES * _LANES  # 1024 pixels => TILE_S multiple of 8
    tp_target = (target_tile_bytes // max(1, c * itemsize)) // chunk * chunk
    tp_target = max(chunk, tp_target)
    if hw128 <= tp_target:
        return hw128, 1, hw128
    num_tiles = _cdiv(hw128, tp_target)
    tile_pixels = _round_up(_cdiv(hw128, num_tiles), chunk)
    return tile_pixels, num_tiles, num_tiles * tile_pixels


def symkl2d(inputs1, inputs2, *, target_tile_bytes=1 << 20):
    """Forward pass of Symkl2d (size_average=True; weight/n_target_ch unused by forward)."""
    assert inputs1.shape == inputs2.shape and inputs1.ndim == 4
    N, C, H, W = inputs1.shape
    HW = H * W

    itemsize = jnp.dtype(inputs1.dtype).itemsize
    tile_pixels, num_tiles, hw_pad = _pick_pixel_tiling(HW, C, itemsize, target_tile_bytes)
    tile_s = tile_pixels // _LANES
    s_total = hw_pad // _LANES

    # Free NCHW-preserving view: (N, C, H, W) -> (N, C, HW) -> (N, C, S, 128).
    x1 = inputs1.reshape(N, C, HW)
    x2 = inputs2.reshape(N, C, HW)
    if hw_pad != HW:
        # Zero-logit padding: identical constant logits in both inputs make the padded
        # pixels' symmetric-KL contribution exactly zero (and we divide by the original
        # element count below).
        pad = ((0, 0), (0, 0), (0, hw_pad - HW))
        x1 = jnp.pad(x1, pad)
        x2 = jnp.pad(x2, pad)
    x1 = x1.reshape(N, C, s_total, _LANES)
    x2 = x2.reshape(N, C, s_total, _LANES)

    in_spec = pl.BlockSpec((1, C, tile_s, _LANES), lambda n, p: (n, 0, p, 0))

    partial = pl.pallas_call(
        _symkl2d_kernel,
        out_shape=jax.ShapeDtypeStruct((N, num_tiles, _LANES), jnp.float32),
        grid_spec=pltpu.PrefetchScalarGridSpec(
            num_scalar_prefetch=0,
            grid=(N, num_tiles),
            in_specs=[in_spec, in_spec],
            out_specs=pl.BlockSpec((1, 1, _LANES), lambda n, p: (n, p, 0)),
        ),
        compiler_params=pltpu.CompilerParams(
            # Independent per-(batch, pixel-tile) partial sums: both grid axes can be
            # sharded across TensorCores (v7x megacore); no cross-step state.
            dimension_semantics=("parallel", "parallel"),
            vmem_limit_bytes=48 * 1024 * 1024,
        ),
    )(x1, x2)

    total = jnp.sum(partial)
    # size_average=True -> each kl_div is a mean over all N*C*H*W elements.
    return 0.5 * total / jnp.float32(N * C * H * W)


if __name__ == "__main__":
    key = jax.random.PRNGKey(0)
    k1, k2 = jax.random.split(key)

    N, C, H, W = 2, 4, 16, 16
    inputs1 = jax.random.normal(k1, (N, C, H, W), dtype=jnp.float32)
    inputs2 = jax.random.normal(k2, (N, C, H, W), dtype=jnp.float32)

    loss = symkl2d(inputs1, inputs2)
    jax.block_until_ready(loss)

    # Pure-JAX reference mirroring the PyTorch module exactly.
    p1 = jax.nn.softmax(inputs1, axis=1)
    p2 = jax.nn.softmax(inputs2, axis=1)
    lq1 = jax.nn.log_softmax(p1, axis=1)
    lq2 = jax.nn.log_softmax(p2, axis=1)
    kl12 = jnp.mean(p2 * (jnp.log(p2) - lq1))   # F.kl_div(log_prob1, prob2, 'mean')
    kl21 = jnp.mean(p1 * (jnp.log(p1) - lq2))   # F.kl_div(log_prob2, prob1, 'mean')
    ref = 0.5 * (kl12 + kl21)

    assert jnp.allclose(loss, ref, atol=1e-6, rtol=1e-4), (loss, ref)
    print("KERNEL_OK")
</pallas_src>

<mosaic_0001>
module attributes {stable_mosaic.version = 11 : i64} {
  func.func @_symkl2d_kernel(%arg0: i32, %arg1: i32, %arg2: memref<1x4x2x128xf32, #tpu.memory_space<vmem>>, %arg3: memref<1x4x2x128xf32, #tpu.memory_space<vmem>>, %arg4: memref<1x1x128xf32, #tpu.memory_space<vmem>>) attributes {dimension_semantics = [#tpu.dimension_semantics<parallel>, #tpu.dimension_semantics<parallel>], iteration_bounds = array<i64: 2, 1>, scalar_prefetch = 0 : i64, scratch_operands = 0 : i64, tpu.core_type = #tpu.core_type<tc>, window_params = [{transform_indices = @transform_0, window_bounds = array<i64: 1, 4, 2, 128>}, {transform_indices = @transform_1, window_bounds = array<i64: 1, 4, 2, 128>}, {transform_indices = @transform_2, window_bounds = array<i64: 1, 1, 128>}]} {
    %c0 = arith.constant 0 : index
    %c0_0 = arith.constant 0 : index
    %c0_1 = arith.constant 0 : index
    %c0_2 = arith.constant 0 : index
    %0 = vector.load %arg2[%c0, %c0_0, %c0_1, %c0_2] : memref<1x4x2x128xf32, #tpu.memory_space<vmem>>, vector<1x4x2x128xf32>
    %c0_3 = arith.constant 0 : index
    %c0_4 = arith.constant 0 : index
    %c0_5 = arith.constant 0 : index
    %c0_6 = arith.constant 0 : index
    %1 = vector.load %arg3[%c0_3, %c0_4, %c0_5, %c0_6] : memref<1x4x2x128xf32, #tpu.memory_space<vmem>>, vector<1x4x2x128xf32>
    %cst = arith.constant dense<0xFF800000> : vector<1x2x128xf32>
    %2 = vector.multi_reduction <maximumf>, %0, %cst [1] : vector<1x4x2x128xf32> to vector<1x2x128xf32>
    %3 = vector.shape_cast %2 : vector<1x2x128xf32> to vector<1x1x2x128xf32>
    %4 = vector.broadcast %3 : vector<1x1x2x128xf32> to vector<1x4x2x128xf32>
    %5 = arith.subf %0, %4 : vector<1x4x2x128xf32>
    %6 = math.exp %5 : vector<1x4x2x128xf32>
    %cst_7 = arith.constant dense<0.000000e+00> : vector<1x2x128xf32>
    %7 = vector.multi_reduction <add>, %6, %cst_7 [1] : vector<1x4x2x128xf32> to vector<1x2x128xf32>
    %8 = vector.shape_cast %7 : vector<1x2x128xf32> to vector<1x1x2x128xf32>
    %cst_8 = arith.constant 1.000000e+00 : f32
    %9 = vector.broadcast %cst_8 : f32 to vector<1x1x2x128xf32>
    %10 = arith.divf %9, %8 : vector<1x1x2x128xf32>
    %11 = vector.broadcast %10 : vector<1x1x2x128xf32> to vector<1x4x2x128xf32>
    %12 = arith.mulf %6, %11 : vector<1x4x2x128xf32>
    %13 = math.log %8 : vector<1x1x2x128xf32>
    %14 = vector.broadcast %13 : vector<1x1x2x128xf32> to vector<1x4x2x128xf32>
    %15 = arith.subf %5, %14 : vector<1x4x2x128xf32>
    %cst_9 = arith.constant dense<0xFF800000> : vector<1x2x128xf32>
    %16 = vector.multi_reduction <maximumf>, %1, %cst_9 [1] : vector<1x4x2x128xf32> to vector<1x2x128xf32>
    %17 = vector.shape_cast %16 : vector<1x2x128xf32> to vector<1x1x2x128xf32>
    %18 = vector.broadcast %17 : vector<1x1x2x128xf32> to vector<1x4x2x128xf32>
    %19 = arith.subf %1, %18 : vector<1x4x2x128xf32>
    %20 = math.exp %19 : vector<1x4x2x128xf32>
    %cst_10 = arith.constant dense<0.000000e+00> : vector<1x2x128xf32>
    %21 = vector.multi_reduction <add>, %20, %cst_10 [1] : vector<1x4x2x128xf32> to vector<1x2x128xf32>
    %22 = vector.shape_cast %21 : vector<1x2x128xf32> to vector<1x1x2x128xf32>
    %cst_11 = arith.constant 1.000000e+00 : f32
    %23 = vector.broadcast %cst_11 : f32 to vector<1x1x2x128xf32>
    %24 = arith.divf %23, %22 : vector<1x1x2x128xf32>
    %25 = vector.broadcast %24 : vector<1x1x2x128xf32> to vector<1x4x2x128xf32>
    %26 = arith.mulf %20, %25 : vector<1x4x2x128xf32>
    %27 = math.log %22 : vector<1x1x2x128xf32>
    %28 = vector.broadcast %27 : vector<1x1x2x128xf32> to vector<1x4x2x128xf32>
    %29 = arith.subf %19, %28 : vector<1x4x2x128xf32>
    %30 = math.exp %12 : vector<1x4x2x128xf32>
    %cst_12 = arith.constant dense<0.000000e+00> : vector<1x2x128xf32>
    %31 = vector.multi_reduction <add>, %30, %cst_12 [1] : vector<1x4x2x128xf32> to vector<1x2x128xf32>
    %32 = vector.shape_cast %31 : vector<1x2x128xf32> to vector<1x1x2x128xf32>
    %33 = math.log %32 : vector<1x1x2x128xf32>
    %34 = math.exp %26 : vector<1x4x2x128xf32>
    %cst_13 = arith.constant dense<0.000000e+00> : vector<1x2x128xf32>
    %35 = vector.multi_reduction <add>, %34, %cst_13 [1] : vector<1x4x2x128xf32> to vector<1x2x128xf32>
    %36 = vector.shape_cast %35 : vector<1x2x128xf32> to vector<1x1x2x128xf32>
    %37 = math.log %36 : vector<1x1x2x128xf32>
    %38 = arith.mulf %12, %15 : vector<1x4x2x128xf32>
    %39 = arith.mulf %26, %29 : vector<1x4x2x128xf32>
    %40 = arith.addf %38, %39 : vector<1x4x2x128xf32>
    %41 = arith.mulf %12, %26 : vector<1x4x2x128xf32>
    %cst_14 = arith.constant 2.000000e+00 : f32
    %42 = vector.broadcast %cst_14 : f32 to vector<1x4x2x128xf32>
    %43 = arith.mulf %42, %41 : vector<1x4x2x128xf32>
    %44 = arith.subf %40, %43 : vector<1x4x2x128xf32>
    %cst_15 = arith.constant dense<0.000000e+00> : vector<1x2x128xf32>
    %45 = vector.multi_reduction <add>, %44, %cst_15 [1] : vector<1x4x2x128xf32> to vector<1x2x128xf32>
    %46 = vector.shape_cast %45 : vector<1x2x128xf32> to vector<1x1x2x128xf32>
    %47 = arith.addf %46, %33 : vector<1x1x2x128xf32>
    %48 = arith.addf %47, %37 : vector<1x1x2x128xf32>
    %cst_16 = arith.constant dense<0.000000e+00> : vector<1x1x128xf32>
    %49 = vector.multi_reduction <add>, %48, %cst_16 [2] : vector<1x1x2x128xf32> to vector<1x1x128xf32>
    %c0_17 = arith.constant 0 : index
    %c0_18 = arith.constant 0 : index
    %c0_19 = arith.constant 0 : index
    %50 = vector.load %arg4[%c0_17, %c0_18, %c0_19] : memref<1x1x128xf32, #tpu.memory_space<vmem>>, vector<1x1x128xf32>
    tpu.vector_store %arg4[%c0_17, %c0_18, %c0_19], %49 {strides = array<i32>} : memref<1x1x128xf32, #tpu.memory_space<vmem>>, vector<1x1x128xf32>,
    return
  }
  func.func @transform_0(%arg0: i32, %arg1: i32) -> (i32, i32, i32, i32) {
    %c0_i32 = arith.constant 0 : i32
    %c0_i32_0 = arith.constant 0 : i32
    %c0_i32_1 = arith.constant 0 : i32
    return %arg0, %c0_i32, %arg1, %c0_i32_0 : i32, i32, i32, i32
  }
  func.func @transform_1(%arg0: i32, %arg1: i32) -> (i32, i32, i32, i32) {
    %c0_i32 = arith.constant 0 : i32
    %c0_i32_0 = arith.constant 0 : i32
    %c0_i32_1 = arith.constant 0 : i32
    return %arg0, %c0_i32, %arg1, %c0_i32_0 : i32, i32, i32, i32
  }
  func.func @transform_2(%arg0: i32, %arg1: i32) -> (i32, i32, i32) {
    %c0_i32 = arith.constant 0 : i32
    %c0_i32_0 = arith.constant 0 : i32
    return %arg0, %arg1, %c0_i32 : i32, i32, i32
  }
}

</mosaic_0001>

<llo_original>
// kernel: tpu_custom_call.1
$region0: #{tpu_custom_call.1}
  #allocation0 [shape = 'u32[]', space=smem, size = 0x4, offset = 0x4, fixed_abs, tag = 'smem constant byte address 0x4 - core index']
  #allocation1 [shape = 'u32[144,128]{1,0:T(1,128)}', space=vmem, size = 0x12000, scoped, tag = 'internal scratch']
  %s0 = inlined_call_operand.hbm [shape: f32[2,4,2,128], index: 0, kind: input, shape index: {}]
  %s1 = inlined_call_operand.hbm [shape: f32[2,4,2,128], index: 1, kind: input, shape index: {}]
  %s2 = inlined_call_operand.hbm [shape: f32[2,1,128], index: 2, kind: output, shape index: {}]
  %s3 = sld [smem:[#allocation0]]
  $region49: #{tpu_custom_call.1} parent=0
    _
  %s5 = ssub.s32 1, %s3
  %s6 = scalar_select 0, %s5, %s3
  $region1: #{tpu_custom_call.1} parent=0
    #allocation2 [shape = 'u8[8192]{0}', space=vmem, size = 0x2000, scoped, tag = 'input window, operand 0']
    #allocation3 [shape = 's32[2]{0}', space=sflag, size = 0x8, scoped, tag = 'scoped memory for tpu_custom_call.1']
    #allocation4 [shape = 's32[2]{0}', space=sflag, size = 0x8, scoped, tag = 'scoped memory for tpu_custom_call.1']
    #allocation5 [shape = 'u8[8192]{0}', space=vmem, size = 0x2000, scoped, tag = 'input window, operand 1']
    #allocation6 [shape = 's32[2]{0}', space=sflag, size = 0x8, scoped, tag = 'scoped memory for tpu_custom_call.1']
    #allocation7 [shape = 'u8[1024]{0}', space=vmem, size = 0x400, scoped, tag = 'output window, operand 0']
    %7 = vsyncpa [#allocation3], 0
    %s8 = scalar_lea.sflag [#allocation3], 1
    %9 = vsyncpa %s8, 0
    %10 = vsyncpa [#allocation6], 0
    %s11 = scalar_lea.sflag [#allocation6], 1
    %12 = vsyncpa %s11, 0
    %13 = vsyncpa [#allocation4], 0
    %s14 = scalar_lea.sflag [#allocation4], 1
    %15 = vsyncpa %s14, 0
    loop: start=0, step=1, limit=4
    $region2: #{tpu_custom_call.1} parent=1 // loop_pre_header
      _
    $region3: #{tpu_custom_call.1} parent=1 // loop_header
      %s17 = sphi 0, %s21
      %p18 = scmp.ge.s32.totalorder %s17, 4
      %s24 = sphi 0, %s36
      %s25 = sphi 0, %s32
      %s26 = sphi 0, %s24
      %s27 = sphi 0, %s25
      %s28 = sphi 0, %s26
      %s29 = sphi 0, %s27
      %s41 = sphi 0, %s43
      %s44 = sphi 0, %s41
      %s45 = sphi 0, %s44
      %s61 = sphi 0, %s45
      %s69 = sphi 0, %s71
      %s72 = sphi 0, %s69
      %s73 = sphi 0, %s72
      %s89 = sphi 0, %s73
      %s97 = sphi 0, %s99
      %s100 = sphi 0, %s97
      %s101 = sphi 0, %s100
      %s117 = sphi 0, %s101
    $region4: #{tpu_custom_call.1} parent=1 // loop_header_branch
      %20 = sbr.rel (%p18) target = $region8
    $region5: #{tpu_custom_call.1} parent=1 // loop_body
      %s22 = ssub.s32 %s17, 1
      %s23 = ssub.s32 %s17, 2
      %s30 = sadd.s32 1, %s25
      %p31 = scmp.ge.s32.totalorder %s30, 1
      %s32 = scalar_select %p31, 0, %s30
      %s33 = sadd.s32 1, %s24
      %s34 = scalar_select %p31, %s33, %s24
      %p35 = scmp.ge.s32.totalorder %s34, 2
      %s36 = scalar_select %p35, 0, %s34
      %s37 = ssub.s32 %s24, %s36
      %s38 = ssub.s32 %s25, %s32
      %s39 = sor.u32 %s37, %s38
      %p40 = scmp.eq.s32.totalorder %s39, 0
      %s42 = sadd.s32 %s41, 1
      %s43 = scalar_select %p40, %s41, %s42
      %p46 = pneg %p40
      %p47 = scmp.eq.s32.totalorder %s17, 1
      %p48 = por %p46, %p47
      %p49 = scmp.ne.s32.totalorder %s41, %s44
      %p50 = scmp.eq.s32.totalorder %s17, 0
      %p51 = por %p49, %p50
      %p52 = scmp.ne.s32.totalorder %s41, %s44
      %p53 = scmp.eq.s32.totalorder %s22, 1
      %p54 = por %p52, %p53
      %p55 = scmp.ne.s32.totalorder %s44, %s45
      %p56 = scmp.eq.s32.totalorder %s22, 0
      %p57 = por %p55, %p56
      %p58 = scmp.ne.s32.totalorder %s44, %s45
      %p59 = scmp.eq.s32.totalorder %s23, 1
      %p60 = por %p58, %p59
      %p62 = scmp.ne.s32.totalorder %s45, %s61
      %p63 = scmp.eq.s32.totalorder %s23, 0
      %p64 = por %p62, %p63
      %s65 = ssub.s32 %s24, %s36
      %s66 = ssub.s32 %s25, %s32
      %s67 = sor.u32 %s65, %s66
      %p68 = scmp.eq.s32.totalorder %s67, 0
      %s70 = sadd.s32 %s69, 1
      %s71 = scalar_select %p68, %s69, %s70
      %p74 = pneg %p68
      %p75 = scmp.eq.s32.totalorder %s17, 1
      %p76 = por %p74, %p75
      %p77 = scmp.ne.s32.totalorder %s69, %s72
      %p78 = scmp.eq.s32.totalorder %s17, 0
      %p79 = por %p77, %p78
      %p80 = scmp.ne.s32.totalorder %s69, %s72
      %p81 = scmp.eq.s32.totalorder %s22, 1
      %p82 = por %p80, %p81
      %p83 = scmp.ne.s32.totalorder %s72, %s73
      %p84 = scmp.eq.s32.totalorder %s22, 0
      %p85 = por %p83, %p84
      %p86 = scmp.ne.s32.totalorder %s72, %s73
      %p87 = scmp.eq.s32.totalorder %s23, 1
      %p88 = por %p86, %p87
      %p90 = scmp.ne.s32.totalorder %s73, %s89
      %p91 = scmp.eq.s32.totalorder %s23, 0
      %p92 = por %p90, %p91
      %s93 = ssub.s32 %s24, %s36
      %s94 = ssub.s32 %s25, %s32
      %s95 = sor.u32 %s93, %s94
      %p96 = scmp.eq.s32.totalorder %s95, 0
      %s98 = sadd.s32 %s97, 1
      %s99 = scalar_select %p96, %s97, %s98
      %p102 = pneg %p96
      %p103 = scmp.eq.s32.totalorder %s17, 1
      %p104 = por %p102, %p103
      %p105 = scmp.ne.s32.totalorder %s97, %s100
      %p106 = scmp.eq.s32.totalorder %s17, 0
      %p107 = por %p105, %p106
      %p108 = scmp.ne.s32.totalorder %s97, %s100
      %p109 = scmp.eq.s32.totalorder %s22, 1
      %p110 = por %p108, %p109
      %p111 = scmp.ne.s32.totalorder %s100, %s101
      %p112 = scmp.eq.s32.totalorder %s22, 0
      %p113 = por %p111, %p112
      %p114 = scmp.ne.s32.totalorder %s100, %s101
      %p115 = scmp.eq.s32.totalorder %s23, 1
      %p116 = por %p114, %p115
      %p118 = scmp.ne.s32.totalorder %s101, %s117
      %p119 = scmp.eq.s32.totalorder %s23, 0
      %p120 = por %p118, %p119
      %p121 = scmp.le.s32.totalorder 1, %s17
      %p122 = scmp.lt.s32.totalorder %s17, 3
      %p123 = pnand %p121, %p122
      %p124 = pneg %p123
      // Predicated region
      $region9: #{tpu_custom_call.1} parent=5 // pred_check
        _
      $region10: #{tpu_custom_call.1} parent=5 // pred_check_branch
        %126 = sbr.rel (%p123) target = $region12
      $region11: #{tpu_custom_call.1} parent=5 // pred_region
        %s127 = ssub.s32 %s17, 1
      $region12: #{tpu_custom_call.1} parent=5 // pred_fallthru
        _
      %p128 = scmp.lt.s32.totalorder %s17, 2
      // Predicated region
      $region13: #{tpu_custom_call.1} parent=5 // pred_check
        %p129 = pneg %p128
      $region14: #{tpu_custom_call.1} parent=5 // pred_check_branch
        %131 = sbr.rel (%p129) target = $region16
      $region15: #{tpu_custom_call.1} parent=5 // pred_region
        // Predicated region
        $region17: #{tpu_custom_call.1} parent=15 // pred_check
          %p132 = pneg %p51
        $region18: #{tpu_custom_call.1} parent=15 // pred_check_branch
          %134 = sbr.rel (%p132) target = $region20
        $region19: #{tpu_custom_call.1} parent=15 // pred_region
          %s135 = sand.u32 %s41, 1
          %s136 = scalar_lea.sflag [#allocation3], %s135
          %s137 = sand.u32 %s41, 1
          %s138 = smul.addr %s137, 8
          %s139 = scalar_lea.vmem [#allocation2], %s138
          %s141 = ssub.s32 128, 128
          %142 = vsyncadd %s136, %s141
          %s143 = smul.addr %s24, 4
          %s144 = sadd.s32 %s25, %s143
          %s145 = smul.addr %s144, 32
          %s146 = scalar_lea.hbm %s0, %s145
          %s147 = sshll.u32 %s139, 4
          %s148 = int_to_ptr.vmem [resolvable:$true] %s147
          %153 = dma.hbm_to_vmem [thread:$0]  %s146, 128, %s148, %s136, 32, 32, 2
        $region20: #{tpu_custom_call.1} parent=15 // pred_fallthru
          _
        // Predicated region
        $region21: #{tpu_custom_call.1} parent=15 // pred_check
          %p154 = pneg %p79
        $region22: #{tpu_custom_call.1} parent=15 // pred_check_branch
          %156 = sbr.rel (%p154) target = $region24
        $region23: #{tpu_custom_call.1} parent=15 // pred_region
          %s157 = sand.u32 %s69, 1
          %s158 = scalar_lea.sflag [#allocation6], %s157
          %s159 = sand.u32 %s69, 1
          %s160 = smul.addr %s159, 8
          %s161 = scalar_lea.vmem [#allocation5], %s160
          %s163 = ssub.s32 128, 128
          %164 = vsyncadd %s158, %s163
          %s165 = smul.addr %s24, 4
          %s166 = sadd.s32 %s25, %s165
          %s167 = smul.addr %s166, 32
          %s168 = scalar_lea.hbm %s1, %s167
          %s169 = sshll.u32 %s161, 4
          %s170 = int_to_ptr.vmem [resolvable:$true] %s169
          %175 = dma.hbm_to_vmem [thread:$0]  %s168, 128, %s170, %s158, 32, 32, 2
        $region24: #{tpu_custom_call.1} parent=15 // pred_fallthru
          _
      $region16: #{tpu_custom_call.1} parent=5 // pred_fallthru
        _
      %p176 = scmp.le.s32.totalorder 1, %s17
      %p177 = scmp.lt.s32.totalorder %s17, 3
      %p178 = pnand %p176, %p177
      %p179 = pneg %p178
      // Predicated region
      $region25: #{tpu_custom_call.1} parent=5 // pred_check
        _
      $region26: #{tpu_custom_call.1} parent=5 // pred_check_branch
        %181 = sbr.rel (%p178) target = $region28
      $region27: #{tpu_custom_call.1} parent=5 // pred_region
        %s182 = ssub.s32 %s17, 1
        %s183 = sand.u32 %s44, 1
        %s184 = scalar_lea.sflag [#allocation3], %s183
        %s185 = sand.u32 %s44, 1
        %s186 = smul.addr %s185, 8
        %s187 = scalar_lea.vmem [#allocation2], %s186
        // Predicated region
        $region29: #{tpu_custom_call.1} parent=27 // pred_check
          %p188 = pneg %p57
        $region30: #{tpu_custom_call.1} parent=27 // pred_check_branch
          %190 = sbr.rel (%p188) target = $region32
        $region31: #{tpu_custom_call.1} parent=27 // pred_region
          %191 = dma.done %s184, 128
        $region32: #{tpu_custom_call.1} parent=27 // pred_fallthru
          _
        %s192 = sand.u32 %s72, 1
        %s193 = scalar_lea.sflag [#allocation6], %s192
        %s194 = sand.u32 %s72, 1
        %s195 = smul.addr %s194, 8
        %s196 = scalar_lea.vmem [#allocation5], %s195
        // Predicated region
        $region33: #{tpu_custom_call.1} parent=27 // pred_check
          %p197 = pneg %p85
        $region34: #{tpu_custom_call.1} parent=27 // pred_check_branch
          %199 = sbr.rel (%p197) target = $region36
        $region35: #{tpu_custom_call.1} parent=27 // pred_region
          %200 = dma.done %s193, 128
        $region36: #{tpu_custom_call.1} parent=27 // pred_fallthru
          _
        %s201 = sand.u32 %s44, 1
        %s202 = scalar_lea.sflag [#allocation3], %s201
        %s203 = sand.u32 %s44, 1
        %s204 = smul.addr %s203, 8
        %s205 = scalar_lea.vmem [#allocation2], %s204
        %p206 = pneg %p57
        %p207 = pneg %p54
        %s208 = sand.u32 %s72, 1
        %s209 = scalar_lea.sflag [#allocation6], %s208
        %s210 = sand.u32 %s72, 1
        %s211 = smul.addr %s210, 8
        %s212 = scalar_lea.vmem [#allocation5], %s211
        %p213 = pneg %p85
        %p214 = pneg %p82
        %p215 = pneg %p113
        %p216 = pneg %p110
        %s217 = sand.u32 %s100, 1
        %s218 = scalar_lea.sflag [#allocation4], %s217
        %s219 = sand.u32 %s100, 1
        %s220 = scalar_lea.vmem [#allocation7], %s219
        %v221 = vld [vmem:[%s187] sm:$0x3]
        %v222 = vld [vmem:[%s187 + $0x2] sm:$0x3]
        %v223 = vld [vmem:[%s187 + $0x4] sm:$0x3]
        %v224 = vld [vmem:[%s187 + $0x6] sm:$0x3]
        %v225 = vld [vmem:[%s196] sm:$0x3]
        %v226 = vld [vmem:[%s196 + $0x2] sm:$0x3]
        %v227 = vld [vmem:[%s196 + $0x4] sm:$0x3]
        %v228 = vld [vmem:[%s196 + $0x6] sm:$0x3]
        %vm229 = vcmask 1041408
        %v230 = vsel %vm229, %v221, -inf
        %v231 = vsel %vm229, %v222, -inf
        %v232 = vsel %vm229, %v223, -inf
        %v233 = vsel %vm229, %v224, -inf
        %v234 = vmax.f32 %v230, %v231
        %v235 = vmax.f32 %v232, %v233
        %v236 = vmax.f32 %v234, %v235
        %v237 = vsub.f32 %v221, %v236
        %v238 = vsub.f32 %v222, %v236
        %v239 = vsub.f32 %v223, %v236
        %v240 = vsub.f32 %v224, %v236
        %v241 = vmul.f32 %v237, 1.442695
        %v242 = vpow.pop %v241
        %v243 = vmul.f32 %v238, 1.442695
        %v244 = vpow.pop %v243
        %v245 = vmul.f32 %v239, 1.442695
        %v246 = vpow.pop %v245
        %v247 = vmul.f32 %v240, 1.442695
        %v248 = vpow.pop %v247
        %v249 = vsel %vm229, %v242, 0.0
        %v250 = vsel %vm229, %v244, 0.0
        %v251 = vadd.f32 %v249, %v250
        %v252 = vsel %vm229, %v246, 0.0
        %v253 = vadd.f32 %v251, %v252
        %v254 = vsel %vm229, %v248, 0.0
        %v255 = vadd.f32 %v253, %v254
        %v256 = vrcp.pop %v255
        %v257 = vmul.f32 1.0, %v256
        %v258 = vmul.f32 %v242, %v257
        %v259 = vmul.f32 %v244, %v257
        %v260 = vmul.f32 %v246, %v257
        %v261 = vmul.f32 %v248, %v257
        %v262 = vlog2.pop %v255
        %v263 = vmul.f32 %v262, 0.6931472
        %v264 = vsub.f32 %v237, %v263
        %v265 = vsub.f32 %v238, %v263
        %v266 = vsub.f32 %v239, %v263
        %v267 = vsub.f32 %v240, %v263
        %v268 = vsel %vm229, %v225, -inf
        %v269 = vsel %vm229, %v226, -inf
        %v270 = vsel %vm229, %v227, -inf
        %v271 = vsel %vm229, %v228, -inf
        %v272 = vmax.f32 %v268, %v269
        %v273 = vmax.f32 %v270, %v271
        %v274 = vmax.f32 %v272, %v273
        %v275 = vsub.f32 %v225, %v274
        %v276 = vsub.f32 %v226, %v274
        %v277 = vsub.f32 %v227, %v274
        %v278 = vsub.f32 %v228, %v274
        %v279 = vmul.f32 %v275, 1.442695
        %v280 = vpow.pop %v279
        %v281 = vmul.f32 %v276, 1.442695
        %v282 = vpow.pop %v281
        %v283 = vmul.f32 %v277, 1.442695
        %v284 = vpow.pop %v283
        %v285 = vmul.f32 %v278, 1.442695
        %v286 = vpow.pop %v285
        %v287 = vsel %vm229, %v280, 0.0
        %v288 = vsel %vm229, %v282, 0.0
        %v289 = vadd.f32 %v287, %v288
        %v290 = vsel %vm229, %v284, 0.0
        %v291 = vadd.f32 %v289, %v290
        %v292 = vsel %vm229, %v286, 0.0
        %v293 = vadd.f32 %v291, %v292
        %v294 = vrcp.pop %v293
        %v295 = vmul.f32 1.0, %v294
        %v296 = vmul.f32 %v280, %v295
        %v297 = vmul.f32 %v282, %v295
        %v298 = vmul.f32 %v284, %v295
        %v299 = vmul.f32 %v286, %v295
        %v300 = vlog2.pop %v293
        %v301 = vmul.f32 %v300, 0.6931472
        %v302 = vsub.f32 %v275, %v301
        %v303 = vsub.f32 %v276, %v301
        %v304 = vsub.f32 %v277, %v301
        %v305 = vsub.f32 %v278, %v301
        %v306 = vmul.f32 %v258, 1.442695
        %v307 = vpow.pop %v306
        %v308 = vmul.f32 %v259, 1.442695
        %v309 = vpow.pop %v308
        %v310 = vmul.f32 %v260, 1.442695
        %v311 = vpow.pop %v310
        %v312 = vmul.f32 %v261, 1.442695
        %v313 = vpow.pop %v312
        %v314 = vsel %vm229, %v307, 0.0
        %v315 = vsel %vm229, %v309, 0.0
        %v316 = vadd.f32 %v314, %v315
        %v317 = vsel %vm229, %v311, 0.0
        %v318 = vadd.f32 %v316, %v317
        %v319 = vsel %vm229, %v313, 0.0
        %v320 = vadd.f32 %v318, %v319
        %v321 = vlog2.pop %v320
        %v322 = vmul.f32 %v321, 0.6931472
        %v323 = vmul.f32 %v296, 1.442695
        %v324 = vpow.pop %v323
        %v325 = vmul.f32 %v297, 1.442695
        %v326 = vpow.pop %v325
        %v327 = vmul.f32 %v298, 1.442695
        %v328 = vpow.pop %v327
        %v329 = vmul.f32 %v299, 1.442695
        %v330 = vpow.pop %v329
        %v331 = vsel %vm229, %v324, 0.0
        %v332 = vsel %vm229, %v326, 0.0
        %v333 = vadd.f32 %v331, %v332
        %v334 = vsel %vm229, %v328, 0.0
        %v335 = vadd.f32 %v333, %v334
        %v336 = vsel %vm229, %v330, 0.0
        %v337 = vadd.f32 %v335, %v336
        %v338 = vlog2.pop %v337
        %v339 = vmul.f32 %v338, 0.6931472
        %v340 = vmul.f32 %v258, %v264
        %v341 = vmul.f32 %v259, %v265
        %v342 = vmul.f32 %v260, %v266
        %v343 = vmul.f32 %v261, %v267
        %v344 = vmul.f32 %v296, %v302
        %v345 = vmul.f32 %v297, %v303
        %v346 = vmul.f32 %v298, %v304
        %v347 = vmul.f32 %v299, %v305
        %v348 = vadd.f32 %v340, %v344
        %v349 = vadd.f32 %v341, %v345
        %v350 = vadd.f32 %v342, %v346
        %v351 = vadd.f32 %v343, %v347
        %v352 = vmul.f32 %v258, %v296
        %v353 = vmul.f32 %v259, %v297
        %v354 = vmul.f32 %v260, %v298
        %v355 = vmul.f32 %v261, %v299
        %v356 = vmul.f32 %v352, 2.0
        %v357 = vmul.f32 %v353, 2.0
        %v358 = vmul.f32 %v354, 2.0
        %v359 = vmul.f32 %v355, 2.0
        %v360 = vsub.f32 %v348, %v356
        %v361 = vsub.f32 %v349, %v357
        %v362 = vsub.f32 %v350, %v358
        %v363 = vsub.f32 %v351, %v359
        %v364 = vsel %vm229, %v360, 0.0
        %v365 = vsel %vm229, %v361, 0.0
        %v366 = vadd.f32 %v364, %v365
        %v367 = vsel %vm229, %v362, 0.0
        %v368 = vadd.f32 %v366, %v367
        %v369 = vsel %vm229, %v363, 0.0
        %v370 = vadd.f32 %v368, %v369
        %v371 = vadd.f32 %v370, %v322
        %v372 = vadd.f32 %v371, %v339
        %v373 = vsel %vm229, %v372, 0.0
        %v374 = vrot.slane %v373, 4
        %v375 = vadd.f32 %v373, %v374
        %v376 = vrot.slane %v375, 2
        %v377 = vadd.f32 %v375, %v376
        %v378 = vrot.slane %v377, 1
        %v379 = vadd.f32 %v377, %v378
        %380 = vst [vmem:[%s220] sm:$0x1] %v379
        %s381 = sand.u32 %s100, 1
        %s382 = scalar_lea.sflag [#allocation4], %s381
        %s383 = sand.u32 %s100, 1
        %s384 = scalar_lea.vmem [#allocation7], %s383
        // Predicated region
        $region37: #{tpu_custom_call.1} parent=27 // pred_check
          %p385 = pneg %p110
        $region38: #{tpu_custom_call.1} parent=27 // pred_check_branch
          %387 = sbr.rel (%p385) target = $region40
        $region39: #{tpu_custom_call.1} parent=27 // pred_region
          %s389 = ssub.s32 16, 16
          %390 = vsyncadd %s382, %s389
          %s391 = sadd.s32 %s27, %s26
          %s392 = smul.addr %s391, 16
          %s393 = scalar_lea.hbm %s2, %s392
          %s395 = sshll.u32 %s384, 4
          %s396 = int_to_ptr.vmem [resolvable:$true] %s395
          %398 = dma.vmem_to_hbm [thread:$0]  %s396, 16, %s393, %s382
        $region40: #{tpu_custom_call.1} parent=27 // pred_fallthru
          _
      $region28: #{tpu_custom_call.1} parent=5 // pred_fallthru
        _
      %p399 = scmp.le.s32.totalorder 2, %s17
      // Predicated region
      $region41: #{tpu_custom_call.1} parent=5 // pred_check
        %p400 = pneg %p399
      $region42: #{tpu_custom_call.1} parent=5 // pred_check_branch
        %402 = sbr.rel (%p400) target = $region44
      $region43: #{tpu_custom_call.1} parent=5 // pred_region
        %s403 = ssub.s32 %s17, 2
        // Predicated region
        $region45: #{tpu_custom_call.1} parent=43 // pred_check
          %p404 = pneg %p116
        $region46: #{tpu_custom_call.1} parent=43 // pred_check_branch
          %406 = sbr.rel (%p404) target = $region48
        $region47: #{tpu_custom_call.1} parent=43 // pred_region
          %s407 = sand.u32 %s101, 1
          %s408 = scalar_lea.sflag [#allocation4], %s407
          %s409 = sand.u32 %s101, 1
          %s410 = scalar_lea.vmem [#allocation7], %s409
          %411 = dma.done %s408, 16
        $region48: #{tpu_custom_call.1} parent=43 // pred_fallthru
          _
      $region44: #{tpu_custom_call.1} parent=5 // pred_fallthru
        _
    $region6: #{tpu_custom_call.1} parent=1 // loop_footer
      %s21 = sadd.s32 1, %s17
    $region7: #{tpu_custom_call.1} parent=1 // loop_footer_branch
      %16 = sbr.rel target = $region3
    $region8: #{tpu_custom_call.1} parent=1 // loop_exit
      _
    %412 = vsyncpa [#allocation3], 1
    %s413 = scalar_lea.sflag [#allocation3], 1
    %414 = vsyncpa %s413, 1
    %415 = vsyncpa [#allocation6], 1
    %s416 = scalar_lea.sflag [#allocation6], 1
    %417 = vsyncpa %s416, 1
    %418 = vsyncpa [#allocation4], 1
    %s419 = scalar_lea.sflag [#allocation4], 1
    %420 = vsyncpa %s419, 1

</llo_original>
